<compile_context>
chip_gen: v5e
topology: v5e:2x2
jax: 0.10.0
libtpu: 0.0.40
codegen_flags: <defaults>
</compile_context>

<pallas_src>
import functools

import jax
import jax.numpy as jnp
from jax.experimental import pallas as pl
from jax.experimental.pallas import tpu as pltpu

# AsymmetricLoss hyper-parameters (defaults from the PyTorch __init__).
MARGIN = 0.0
GAMMA_NEG = 4.0
GAMMA_POS = 0.0
CLIP = 0.05
EPS = 1e-08


def _asl_kernel(x_ref, t_ref, loss_ref, pos_ref, neg_ref, *, tile_rows, total_rows):
    x = x_ref[...].astype(jnp.float32)
    t = t_ref[...].astype(jnp.float32)

    positive_mask = (t > MARGIN).astype(jnp.float32)
    negative_mask = (t < MARGIN).astype(jnp.float32)

    sig = jax.nn.sigmoid(x)                      # input_sigmoid_pos
    sig_neg = 1.0 - sig                          # input_sigmoid_neg
    if CLIP is not None and CLIP > 0:
        sig_neg = jnp.minimum(sig_neg + CLIP, 1.0)

    # Fused single-log form of
    #   -(pos*log(clamp(sig,eps)) + neg*log(clamp(sig_neg,eps))).
    # pos/neg are mutually exclusive; where neither holds the log argument is 1
    # so the (zeroed) term is exact.  Saves one EUP log per element.
    log_arg = (sig * positive_mask + sig_neg * negative_mask
               + (1.0 - positive_mask - negative_mask))
    loss = -(positive_mask + negative_mask) * jnp.log(jnp.maximum(log_arg, EPS))

    if GAMMA_NEG > 0 or GAMMA_POS > 0:
        if GAMMA_POS == 0.0 and GAMMA_NEG == 4.0:
            # Compile-time specialization of pow(1 - prob, gamma) for the
            # default gammas: positives/neutral get weight 1 (pow(.,0)==1),
            # negatives get (1 - sig_neg)^4 via two VPU squarings.
            base = 1.0 - sig_neg
            sq = base * base
            focal = jnp.where(negative_mask > 0.0, sq * sq, 1.0)
        else:
            prob = sig * positive_mask + sig_neg * negative_mask
            gamma = GAMMA_POS * positive_mask + GAMMA_NEG * negative_mask
            # pow via exp(gamma*log(base)); 1e-30 clamp keeps pow(0,0) == 1.
            focal = jnp.exp(gamma * jnp.log(jnp.maximum(1.0 - prob, 1e-30)))
        loss = loss * focal

    loss_ref[...] = loss.astype(loss_ref.dtype)

    # Meter partials.  The last grid step may be a partial block: rows past
    # `total_rows` hold unspecified data, so mask them with a sublane-iota
    # compare (jnp.where, not multiply, to kill any NaN/inf garbage).
    row0 = pl.program_id(0) * tile_rows
    row_ids = jax.lax.broadcasted_iota(jnp.int32, (tile_rows, 1), 0)
    valid = row_ids < (total_rows - row0)
    loss_v = jnp.where(valid, loss, 0.0)

    pos_part = jnp.sum(loss_v * positive_mask, axis=0, keepdims=True)   # (1, C)
    neg_part = jnp.sum(loss_v, axis=0, keepdims=True) - pos_part        # total - pos
    pos_ref[...] = pos_part[jnp.newaxis]                                # (1, 1, C)
    neg_ref[...] = neg_part[jnp.newaxis]


@functools.partial(jax.jit, static_argnames=("block_rows",))
def asymmetric_loss(x, target, *, block_rows=None):
    """Returns (elementwise_loss (B, C), pos_sum scalar, neg_sum scalar).

    pos_sum / neg_sum correspond to the loss_meter['pos'] / loss_meter['neg']
    updates of the PyTorch module (sum of loss over positive / non-positive
    elements); the elementwise loss matches the module's return (reduce=None).
    """
    B, C = x.shape
    rows, cols = B, C

    # Row-tile size tb: multiple of 8 (sublane constraint), block bytes
    # <= ~2 MiB, and at least 2 tiles when there is enough work so both
    # v7x TensorCores share the HBM stream.  No padding is ever materialized:
    # the tail tile is a Pallas partial block.
    if block_rows is None:
        budget = 2 * 1024 * 1024                       # bytes per f32 block
        cap = max(8, (budget // (cols * 4)) // 8 * 8)
    else:
        cap = max(8, (block_rows // 8) * 8)
    if rows <= 8:
        tb = rows                                      # block dim == full dim
    else:
        half = -(-rows // 2)                           # ceil(rows/2)
        half8 = ((half + 7) // 8) * 8
        tb = max(8, min(cap, half8))
    num_tiles = pl.cdiv(rows, tb)

    # bf16 inputs -> bf16 loss (halves write bytes); otherwise f32 as in torch.
    loss_dtype = jnp.bfloat16 if x.dtype == jnp.bfloat16 else jnp.float32

    n = B * C
    in_bytes = jnp.dtype(x.dtype).itemsize + jnp.dtype(target.dtype).itemsize
    out_bytes = jnp.dtype(loss_dtype).itemsize
    cost = pl.CostEstimate(
        flops=20 * n,
        transcendentals=3 * n,                          # sigmoid (exp+recip) + log
        bytes_accessed=(in_bytes + out_bytes) * n + 2 * 4 * num_tiles * cols,
    )

    kernel = functools.partial(_asl_kernel, tile_rows=tb, total_rows=rows)

    loss, pos_part, neg_part = pl.pallas_call(
        kernel,
        out_shape=(
            jax.ShapeDtypeStruct((B, C), loss_dtype),
            jax.ShapeDtypeStruct((num_tiles, 1, cols), jnp.float32),
            jax.ShapeDtypeStruct((num_tiles, 1, cols), jnp.float32),
        ),
        grid=(num_tiles,),
        in_specs=[
            pl.BlockSpec((tb, cols), lambda i: (i, 0)),
            pl.BlockSpec((tb, cols), lambda i: (i, 0)),
        ],
        out_specs=(
            pl.BlockSpec((tb, cols), lambda i: (i, 0)),
            pl.BlockSpec((1, 1, cols), lambda i: (i, 0, 0)),
            pl.BlockSpec((1, 1, cols), lambda i: (i, 0, 0)),
        ),
        compiler_params=pltpu.CompilerParams(
            # Independent row tiles -> shard across TensorCores on megacore
            # parts (v7x); harmless on single-TC v5e/v6e.
            dimension_semantics=("parallel",),
            # ~12 MiB actually used; 32 MiB leaves headroom on every
            # generation (v7x physical VMEM is only 64 MiB per TC).
            vmem_limit_bytes=32 * 1024 * 1024,
        ),
        cost_estimate=cost,
    )(x, target)

    pos_sum = jnp.sum(pos_part)
    neg_sum = jnp.sum(neg_part)
    return loss, pos_sum, neg_sum
    # TODO(synk): loss_meter['pos'/'neg'].update(...) is host-side bookkeeping
    # (AverageMeter); callers feed pos_sum/neg_sum into it outside the kernel.


def _reference(x, t):
    x = x.astype(jnp.float32)
    t = t.astype(jnp.float32)
    pos = (t > MARGIN).astype(jnp.float32)
    neg = (t < MARGIN).astype(jnp.float32)
    sig = jax.nn.sigmoid(x)
    sig_neg = jnp.minimum(1.0 - sig + CLIP, 1.0)
    loss = -(pos * jnp.log(jnp.maximum(sig, EPS))
             + neg * jnp.log(jnp.maximum(sig_neg, EPS)))
    prob = sig * pos + sig_neg * neg
    gamma = GAMMA_POS * pos + GAMMA_NEG * neg
    loss = loss * jnp.power(1.0 - prob, gamma)
    return loss, jnp.sum(loss * pos), jnp.sum(loss * (1.0 - pos))


if __name__ == "__main__":
    key = jax.random.PRNGKey(0)

    # Small (BatchSize, classNum) case matching the module's forward.
    kx, kt = jax.random.split(key)
    B, C = 8, 16
    x = jax.random.normal(kx, (B, C), dtype=jnp.float32) * 2.0
    # multi-label style targets in {-1, 0, 1}: exercises pos / neg / neither
    target = jax.random.randint(kt, (B, C), -1, 2).astype(jnp.float32)

    loss, pos_sum, neg_sum = asymmetric_loss(x, target)
    jax.block_until_ready((loss, pos_sum, neg_sum))
    ref_loss, ref_pos, ref_neg = _reference(x, target)
    assert jnp.allclose(loss, ref_loss, atol=1e-5, rtol=1e-5)
    assert jnp.allclose(pos_sum, ref_pos, atol=1e-4, rtol=1e-5)
    assert jnp.allclose(neg_sum, ref_neg, atol=1e-4, rtol=1e-5)

    # Ragged / multi-tile case: exercises partial last block (no host padding),
    # >1 grid step, in-kernel tail masking of the meter partials.
    kx2, kt2 = jax.random.split(jax.random.PRNGKey(1))
    B2, C2 = 37, 300
    x2 = jax.random.normal(kx2, (B2, C2), dtype=jnp.float32) * 2.0
    target2 = jax.random.randint(kt2, (B2, C2), -1, 2).astype(jnp.float32)
    loss2, pos2, neg2 = asymmetric_loss(x2, target2)
    jax.block_until_ready((loss2, pos2, neg2))
    ref_loss2, ref_pos2, ref_neg2 = _reference(x2, target2)
    assert jnp.allclose(loss2, ref_loss2, atol=1e-5, rtol=1e-5)
    assert jnp.allclose(pos2, ref_pos2, atol=1e-3, rtol=1e-4)
    assert jnp.allclose(neg2, ref_neg2, atol=1e-3, rtol=1e-4)

    # bf16 inputs: loss comes back bf16 (half the write bytes); meters stay f32.
    x3 = x2.astype(jnp.bfloat16)
    target3 = target2.astype(jnp.bfloat16)
    loss3, pos3, neg3 = asymmetric_loss(x3, target3, block_rows=8)
    jax.block_until_ready((loss3, pos3, neg3))
    ref_loss3, ref_pos3, ref_neg3 = _reference(x3, target3)
    assert loss3.dtype == jnp.bfloat16
    assert jnp.allclose(loss3.astype(jnp.float32), ref_loss3, atol=2e-2, rtol=2e-2)
    assert jnp.allclose(pos3, ref_pos3, atol=1e-2, rtol=1e-3)
    assert jnp.allclose(neg3, ref_neg3, atol=1e-2, rtol=1e-3)

    print("KERNEL_OK")
</pallas_src>

<mosaic_0001>
module attributes {stable_mosaic.version = 11 : i64} {
  func.func @_asl_kernel(%arg0: i32, %arg1: memref<8x16xf32, #tpu.memory_space<vmem>>, %arg2: memref<8x16xf32, #tpu.memory_space<vmem>>, %arg3: memref<8x16xf32, #tpu.memory_space<vmem>>, %arg4: memref<1x1x16xf32, #tpu.memory_space<vmem>>, %arg5: memref<1x1x16xf32, #tpu.memory_space<vmem>>) attributes {dimension_semantics = [#tpu.dimension_semantics<parallel>], iteration_bounds = array<i64: 1>, scalar_prefetch = 0 : i64, scratch_operands = 0 : i64, tpu.core_type = #tpu.core_type<tc>, window_params = [{transform_indices = @transform_0, window_bounds = array<i64: 8, 16>}, {transform_indices = @transform_1, window_bounds = array<i64: 8, 16>}, {transform_indices = @transform_2, window_bounds = array<i64: 8, 16>}, {transform_indices = @transform_3, window_bounds = array<i64: 1, 1, 16>}, {transform_indices = @transform_4, window_bounds = array<i64: 1, 1, 16>}]} {
    %c0 = arith.constant 0 : index
    %c0_0 = arith.constant 0 : index
    %0 = vector.load %arg1[%c0, %c0_0] : memref<8x16xf32, #tpu.memory_space<vmem>>, vector<8x16xf32>
    %c0_1 = arith.constant 0 : index
    %c0_2 = arith.constant 0 : index
    %1 = vector.load %arg2[%c0_1, %c0_2] : memref<8x16xf32, #tpu.memory_space<vmem>>, vector<8x16xf32>
    %cst = arith.constant 0.000000e+00 : f32
    %2 = vector.broadcast %cst : f32 to vector<8x16xf32>
    %3 = arith.cmpf ogt, %1, %2 : vector<8x16xf32>
    %4 = arith.extui %3 : vector<8x16xi1> to vector<8x16xi32>
    %5 = arith.sitofp %4 : vector<8x16xi32> to vector<8x16xf32>
    %cst_3 = arith.constant 0.000000e+00 : f32
    %6 = vector.broadcast %cst_3 : f32 to vector<8x16xf32>
    %7 = arith.cmpf olt, %1, %6 : vector<8x16xf32>
    %8 = arith.extui %7 : vector<8x16xi1> to vector<8x16xi32>
    %9 = arith.sitofp %8 : vector<8x16xi32> to vector<8x16xf32>
    %10 = arith.negf %0 : vector<8x16xf32>
    %11 = math.exp %10 : vector<8x16xf32>
    %cst_4 = arith.constant 1.000000e+00 : f32
    %12 = vector.broadcast %cst_4 : f32 to vector<8x16xf32>
    %13 = arith.addf %12, %11 : vector<8x16xf32>
    %14 = arith.divf %12, %13 : vector<8x16xf32>
    %cst_5 = arith.constant 1.000000e+00 : f32
    %15 = vector.broadcast %cst_5 : f32 to vector<8x16xf32>
    %16 = arith.subf %15, %14 : vector<8x16xf32>
    %cst_6 = arith.constant 5.000000e-02 : f32
    %17 = vector.broadcast %cst_6 : f32 to vector<8x16xf32>
    %18 = arith.addf %16, %17 : vector<8x16xf32>
    %cst_7 = arith.constant 1.000000e+00 : f32
    %19 = vector.broadcast %cst_7 : f32 to vector<8x16xf32>
    %20 = arith.minimumf %18, %19 : vector<8x16xf32>
    %21 = arith.mulf %14, %5 : vector<8x16xf32>
    %22 = arith.mulf %20, %9 : vector<8x16xf32>
    %23 = arith.addf %21, %22 : vector<8x16xf32>
    %cst_8 = arith.constant 1.000000e+00 : f32
    %24 = vector.broadcast %cst_8 : f32 to vector<8x16xf32>
    %25 = arith.subf %24, %5 : vector<8x16xf32>
    %26 = arith.subf %25, %9 : vector<8x16xf32>
    %27 = arith.addf %23, %26 : vector<8x16xf32>
    %28 = arith.addf %5, %9 : vector<8x16xf32>
    %cst_9 = arith.constant 0.000000e+00 : f32
    %29 = vector.broadcast %cst_9 : f32 to vector<8x16xf32>
    %30 = arith.subf %29, %28 : vector<8x16xf32>
    %cst_10 = arith.constant 9.99999993E-9 : f32
    %31 = vector.broadcast %cst_10 : f32 to vector<8x16xf32>
    %32 = arith.maximumf %27, %31 : vector<8x16xf32>
    %33 = math.log %32 : vector<8x16xf32>
    %34 = arith.mulf %30, %33 : vector<8x16xf32>
    %cst_11 = arith.constant 1.000000e+00 : f32
    %35 = vector.broadcast %cst_11 : f32 to vector<8x16xf32>
    %36 = arith.subf %35, %20 : vector<8x16xf32>
    %37 = arith.mulf %36, %36 : vector<8x16xf32>
    %cst_12 = arith.constant 0.000000e+00 : f32
    %38 = vector.broadcast %cst_12 : f32 to vector<8x16xf32>
    %39 = arith.cmpf ogt, %9, %38 : vector<8x16xf32>
    %40 = arith.mulf %37, %37 : vector<8x16xf32>
    %cst_13 = arith.constant 1.000000e+00 : f32
    %41 = vector.broadcast %cst_13 : f32 to vector<8x16xf32>
    %42 = arith.select %39, %40, %41 : vector<8x16xi1>, vector<8x16xf32>
    %43 = arith.mulf %34, %42 : vector<8x16xf32>
    %c0_14 = arith.constant 0 : index
    %c0_15 = arith.constant 0 : index
    %44 = vector.load %arg3[%c0_14, %c0_15] : memref<8x16xf32, #tpu.memory_space<vmem>>, vector<8x16xf32>
    tpu.vector_store %arg3[%c0_14, %c0_15], %43 {strides = array<i32>} : memref<8x16xf32, #tpu.memory_space<vmem>>, vector<8x16xf32>,
    %c8_i32 = arith.constant 8 : i32
    %45 = arith.muli %arg0, %c8_i32 : i32
    %46 = tpu.iota {dimensions = array<i32: 0>} : vector<8x1xi32>
    %c8_i32_16 = arith.constant 8 : i32
    %47 = arith.subi %c8_i32_16, %45 : i32
    %48 = vector.broadcast %47 : i32 to vector<8x1xi32>
    %49 = arith.cmpi slt, %46, %48 : vector<8x1xi32>
    %cst_17 = arith.constant 0.000000e+00 : f32
    %50 = vector.shape_cast %49 : vector<8x1xi1> to vector<8x1xi1>
    %51 = vector.broadcast %50 : vector<8x1xi1> to vector<8x16xi1>
    %52 = vector.broadcast %cst_17 : f32 to vector<8x16xf32>
    %53 = arith.select %51, %43, %52 : vector<8x16xi1>, vector<8x16xf32>
    %54 = arith.mulf %53, %5 : vector<8x16xf32>
    %cst_18 = arith.constant dense<0.000000e+00> : vector<16xf32>
    %55 = vector.multi_reduction <add>, %54, %cst_18 [0] : vector<8x16xf32> to vector<16xf32>
    %56 = vector.shape_cast %55 : vector<16xf32> to vector<1x16xf32>
    %cst_19 = arith.constant dense<0.000000e+00> : vector<16xf32>
    %57 = vector.multi_reduction <add>, %53, %cst_19 [0] : vector<8x16xf32> to vector<16xf32>
    %58 = vector.shape_cast %57 : vector<16xf32> to vector<1x16xf32>
    %59 = arith.subf %58, %56 : vector<1x16xf32>
    %60 = vector.shape_cast %56 : vector<1x16xf32> to vector<1x1x16xf32>
    %c0_20 = arith.constant 0 : index
    %c0_21 = arith.constant 0 : index
    %c0_22 = arith.constant 0 : index
    %61 = vector.load %arg4[%c0_20, %c0_21, %c0_22] : memref<1x1x16xf32, #tpu.memory_space<vmem>>, vector<1x1x16xf32>
    tpu.vector_store %arg4[%c0_20, %c0_21, %c0_22], %60 {strides = array<i32>} : memref<1x1x16xf32, #tpu.memory_space<vmem>>, vector<1x1x16xf32>,
    %62 = vector.shape_cast %59 : vector<1x16xf32> to vector<1x1x16xf32>
    %c0_23 = arith.constant 0 : index
    %c0_24 = arith.constant 0 : index
    %c0_25 = arith.constant 0 : index
    %63 = vector.load %arg5[%c0_23, %c0_24, %c0_25] : memref<1x1x16xf32, #tpu.memory_space<vmem>>, vector<1x1x16xf32>
    tpu.vector_store %arg5[%c0_23, %c0_24, %c0_25], %62 {strides = array<i32>} : memref<1x1x16xf32, #tpu.memory_space<vmem>>, vector<1x1x16xf32>,
    return
  }
  func.func @transform_0(%arg0: i32) -> (i32, i32) {
    %c0_i32 = arith.constant 0 : i32
    %c0_i32_0 = arith.constant 0 : i32
    return %arg0, %c0_i32 : i32, i32
  }
  func.func @transform_1(%arg0: i32) -> (i32, i32) {
    %c0_i32 = arith.constant 0 : i32
    %c0_i32_0 = arith.constant 0 : i32
    return %arg0, %c0_i32 : i32, i32
  }
  func.func @transform_2(%arg0: i32) -> (i32, i32) {
    %c0_i32 = arith.constant 0 : i32
    %c0_i32_0 = arith.constant 0 : i32
    return %arg0, %c0_i32 : i32, i32
  }
  func.func @transform_3(%arg0: i32) -> (i32, i32, i32) {
    %c0_i32 = arith.constant 0 : i32
    %c0_i32_0 = arith.constant 0 : i32
    %c0_i32_1 = arith.constant 0 : i32
    return %arg0, %c0_i32, %c0_i32_0 : i32, i32, i32
  }
  func.func @transform_4(%arg0: i32) -> (i32, i32, i32) {
    %c0_i32 = arith.constant 0 : i32
    %c0_i32_0 = arith.constant 0 : i32
    %c0_i32_1 = arith.constant 0 : i32
    return %arg0, %c0_i32, %c0_i32_0 : i32, i32, i32
  }
}

</mosaic_0001>

<llo_original>
// kernel: asymmetric_loss.1
$region0: #{asymmetric_loss.1}
  #allocation0 [shape = 'u32[]', space=smem, size = 0x4, offset = 0x4, fixed_abs, tag = 'smem constant byte address 0x4 - core index']
  #allocation1 [shape = 'u32[72,128]{1,0:T(1,128)}', space=vmem, size = 0x9000, scoped, tag = 'internal scratch']
  %s0 = inlined_call_operand.hbm [shape: f32[8,16], index: 0, kind: input, shape index: {}]
  %s1 = inlined_call_operand.hbm [shape: f32[8,16], index: 1, kind: input, shape index: {}]
  %s2 = inlined_call_operand.hbm [shape: f32[8,16], index: 2, kind: output, shape index: {0}]
  %s3 = inlined_call_operand.vmem [shape: f32[1,1,16], index: 3, kind: output, shape index: {1}]
  %s4 = inlined_call_operand.vmem [shape: f32[1,1,16], index: 4, kind: output, shape index: {2}]
  %5 = xla_tuple %s2, %s3, %s4
  %s6 = sld [smem:[#allocation0]]
  $region42: #{asymmetric_loss.1} parent=0
    _
  %s8 = ssub.s32 1, %s6
  %s9 = scalar_select 0, %s8, %s6
  $region1: #{asymmetric_loss.1} parent=0
    #allocation2 [shape = 'u8[4096]{0}', space=vmem, size = 0x1000, scoped, tag = 'input window, operand 0, single buffered']
    #allocation3 [shape = 's32[1]{0}', space=sflag, size = 0x4, scoped, tag = 'scoped memory for asymmetric_loss.1']
    #allocation4 [shape = 's32[1]{0}', space=sflag, size = 0x4, scoped, tag = 'scoped memory for asymmetric_loss.1']
    #allocation5 [shape = 'u8[4096]{0}', space=vmem, size = 0x1000, scoped, tag = 'input window, operand 1, single buffered']
    #allocation6 [shape = 's32[1]{0}', space=sflag, size = 0x4, scoped, tag = 'scoped memory for asymmetric_loss.1']
    #allocation7 [shape = 'u8[4096]{0}', space=vmem, size = 0x1000, scoped, tag = 'output window, operand 0, single buffered']
    %10 = vsyncpa [#allocation3], 0
    %11 = vsyncpa [#allocation6], 0
    %12 = vsyncpa [#allocation4], 0
    // Predicated region
    $region2: #{asymmetric_loss.1} parent=1 // pred_check
      _
    $region3: #{asymmetric_loss.1} parent=1 // pred_check_branch
      %14 = sbr.rel (0) target = $region5
    $region4: #{asymmetric_loss.1} parent=1 // pred_region
      %16 = vsyncadd [#allocation3], 0
      %s18 = sshll.u32 %s0, 4
      %s19 = int_to_ptr.hbm [resolvable:$true] %s18
      %s20 = sshll.u32 [#allocation2], 4
      %s21 = int_to_ptr.vmem [resolvable:$true] %s20
      %23 = dma.hbm_to_vmem [thread:$0]  %s19, 128, %s21, [#allocation3]
    $region5: #{asymmetric_loss.1} parent=1 // pred_fallthru
      _
    // Predicated region
    $region6: #{asymmetric_loss.1} parent=1 // pred_check
      _
    $region7: #{asymmetric_loss.1} parent=1 // pred_check_branch
      %25 = sbr.rel (0) target = $region9
    $region8: #{asymmetric_loss.1} parent=1 // pred_region
      %27 = vsyncadd [#allocation6], 0
      %s29 = sshll.u32 %s1, 4
      %s30 = int_to_ptr.hbm [resolvable:$true] %s29
      %s31 = sshll.u32 [#allocation5], 4
      %s32 = int_to_ptr.vmem [resolvable:$true] %s31
      %34 = dma.hbm_to_vmem [thread:$0]  %s30, 128, %s32, [#allocation6]
    $region9: #{asymmetric_loss.1} parent=1 // pred_fallthru
      _
    // Predicated region
    $region10: #{asymmetric_loss.1} parent=1 // pred_check
      _
    $region11: #{asymmetric_loss.1} parent=1 // pred_check_branch
      %36 = sbr.rel (0) target = $region13
    $region12: #{asymmetric_loss.1} parent=1 // pred_region
      %38 = dma.done [#allocation3], 128
    $region13: #{asymmetric_loss.1} parent=1 // pred_fallthru
      _
    // Predicated region
    $region14: #{asymmetric_loss.1} parent=1 // pred_check
      _
    $region15: #{asymmetric_loss.1} parent=1 // pred_check_branch
      %40 = sbr.rel (0) target = $region17
    $region16: #{asymmetric_loss.1} parent=1 // pred_region
      %42 = dma.done [#allocation6], 128
    $region17: #{asymmetric_loss.1} parent=1 // pred_fallthru
      _
    %v43 = vld [vmem:[#allocation2] sm:$0xff]
    %v44 = vld [vmem:[#allocation5] sm:$0xff]
    %vm45 = vcmp.gt.f32.partialorder %v44, 0.0
    %v46 = vsel %vm45, 1, 0
    %v47 = vcvt.s32.f32 %v46
    %vm48 = vcmp.lt.f32.partialorder %v44, 0.0
    %v49 = vsel %vm48, 1, 0
    %v50 = vcvt.s32.f32 %v49
    %v51 = vxor.u32 %v43, 2147483648
    %v52 = vmul.f32 %v51, 1.442695
    %v53 = vpow.pop %v52
    %v54 = vadd.f32 %v53, 1.0
    %v55 = vrcp.pop %v54
    %v56 = vmul.f32 %v54, %v55
    %v57 = vsub.f32 1.0, %v56
    %v58 = vmul.f32 %v55, %v57
    %v59 = vadd.f32 %v55, %v58
    %vm60 = vweird.f32 %v54
    %vm61 = vweird.f32 %v55
    %vm62 = vmor %vm60, %vm61
    %v63 = vsel %vm62, %v55, %v59
    %v64 = vand.u32 2147483647, %v54
    %vm65 = vcmp.eq.f32.partialorder %v64, 8.507059e+37
    %v66 = vand.u32 %v54, 2147483648
    %v67 = vor.u32 1.1754944e-38, %v66
    %v68 = vsel %vm65, %v67, %v63
    %v69 = vmul.f32 1.0, %v68
    %v70 = vsub.f32 1.0, %v69
    %v71 = vadd.f32 %v70, 0.05
    %v72 = vmin.f32 %v71, 1.0
    %v73 = vmul.f32 %v69, %v47
    %v74 = vmul.f32 %v72, %v50
    %v75 = vadd.f32 %v73, %v74
    %v76 = vsub.f32 1.0, %v47
    %v77 = vsub.f32 %v76, %v50
    %v78 = vadd.f32 %v75, %v77
    %v79 = vadd.f32 %v47, %v50
    %v80 = vsub.f32 0.0, %v79
    %v81 = vmax.f32 %v78, 1e-08
    %v82 = vlog2.pop %v81
    %v83 = vmul.f32 %v82, 0.6931472
    %v84 = vmul.f32 %v80, %v83
    %v85 = vsub.f32 1.0, %v72
    %v86 = vmul.f32 %v85, %v85
    %vm87 = vcmp.gt.f32.partialorder %v50, 0.0
    %v88 = vmul.f32 %v86, %v86
    %v89 = vsel %vm87, %v88, 1.0
    %v90 = vmul.f32 %v84, %v89
    %vm91 = vcmask 130048
    %92 = vst.msk [vmem:[#allocation7] sm:$0xff] %vm91, %v90
    %s93 = smul.u32 0, 8
    %v94 = vlaneseq
    %v95 = vshrl.u32 %v94, 7
    %s96 = ssub.s32 8, %s93
    %v97 = vstv %s96
    %vm98 = vcmp.lt.s32.totalorder %v95, %v97
    %v99 = vsel %vm98, 1, 0
    %vm100 = vcmp.eq.s32.totalorder %v99, 1
    %v101 = vsel %vm100, %v90, 0.0
    %v102 = vmul.f32 %v101, %v47
    %v103 = vsel %vm91, %v102, 0.0
    %v104 = vrot.slane %v103, 4
    %v105 = vadd.f32 %v103, %v104
    %v106 = vrot.slane %v105, 2
    %v107 = vadd.f32 %v105, %v106
    %v108 = vrot.slane %v107, 1
    %v109 = vadd.f32 %v107, %v108
    %v110 = vsel %vm91, %v101, 0.0
    %v111 = vrot.slane %v110, 4
    %v112 = vadd.f32 %v110, %v111
    %v113 = vrot.slane %v112, 2
    %v114 = vadd.f32 %v112, %v113
    %v115 = vrot.slane %v114, 1
    %v116 = vadd.f32 %v114, %v115
    %v117 = vsub.f32 %v116, %v109
    %vm118 = vcmask 122880
    %119 = vst.msk [vmem:[%s3] sm:$0x1] %vm118, %v109
    %120 = vst.msk [vmem:[%s4] sm:$0x1] %vm118, %v117
    // Predicated region
    $region18: #{asymmetric_loss.1} parent=1 // pred_check
      _
    $region19: #{asymmetric_loss.1} parent=1 // pred_check_branch
      %122 = sbr.rel (0) target = $region21
    $region20: #{asymmetric_loss.1} parent=1 // pred_region
      %124 = vsyncadd [#allocation4], 0
      %s126 = sshll.u32 [#allocation7], 4
      %s127 = int_to_ptr.vmem [resolvable:$true] %s126
      %s128 = sshll.u32 %s2, 4
      %s129 = int_to_ptr.hbm [resolvable:$true] %s128
      %131 = dma.vmem_to_hbm [thread:$0]  %s127, 128, %s129, [#allocation4]
    $region21: #{asymmetric_loss.1} parent=1 // pred_fallthru
      _
    // Predicated region
    $region22: #{asymmetric_loss.1} parent=1 // pred_check
      _
    $region23: #{asymmetric_loss.1} parent=1 // pred_check_branch
      %133 = sbr.rel (0) target = $region25
    $region24: #{asymmetric_loss.1} parent=1 // pred_region
      _
    $region25: #{asymmetric_loss.1} parent=1 // pred_fallthru
      _
    // Predicated region
    $region26: #{asymmetric_loss.1} parent=1 // pred_check
      _
    $region27: #{asymmetric_loss.1} parent=1 // pred_check_branch
      %135 = sbr.rel (0) target = $region29
    $region28: #{asymmetric_loss.1} parent=1 // pred_region
      _
    $region29: #{asymmetric_loss.1} parent=1 // pred_fallthru
      _
    // Predicated region
    $region30: #{asymmetric_loss.1} parent=1 // pred_check
      _
    $region31: #{asymmetric_loss.1} parent=1 // pred_check_branch
      %137 = sbr.rel (0) target = $region33
    $region32: #{asymmetric_loss.1} parent=1 // pred_region
      %139 = dma.done [#allocation4], 128
    $region33: #{asymmetric_loss.1} parent=1 // pred_fallthru
      _
    // Predicated region
    $region34: #{asymmetric_loss.1} parent=1 // pred_check
      _
    $region35: #{asymmetric_loss.1} parent=1 // pred_check_branch
      %141 = sbr.rel (0) target = $region37
    $region36: #{asymmetric_loss.1} parent=1 // pred_region
      _
    $region37: #{asymmetric_loss.1} parent=1 // pred_fallthru
      _
    // Predicated region
    $region38: #{asymmetric_loss.1} parent=1 // pred_check
      _
    $region39: #{asymmetric_loss.1} parent=1 // pred_check_branch
      %143 = sbr.rel (0) target = $region41
    $region40: #{asymmetric_loss.1} parent=1 // pred_region
      _
    $region41: #{asymmetric_loss.1} parent=1 // pred_fallthru
      _
    %144 = vsyncpa [#allocation3], 1
    %145 = vsyncpa [#allocation6], 1
    %146 = vsyncpa [#allocation4], 1

</llo_original>
